<compile_context>
chip_gen: v5e
topology: v5e:2x2
jax: 0.10.0
libtpu: 0.0.40
codegen_flags: <defaults>
</compile_context>

<pallas_src>
import functools

import jax
import jax.numpy as jnp
from jax.experimental import pallas as pl
from jax.experimental.pallas import tpu as pltpu


def _round_up(v: int, m: int) -> int:
    return ((v + m - 1) // m) * m


def _vmem_bytes(ts: int, tn: int, H: int, in_itemsize: int, out_itemsize: int) -> int:
    """Rough double-buffered VMEM footprint estimate for tile (ts, tn)."""
    return (2 * ts * H * in_itemsize        # x input double-buffer
            + 2 * H * tn * in_itemsize      # w_lin double-buffer
            + 2 * ts * tn * out_itemsize    # output double-buffer
            + ts * H * in_itemsize          # y scratch
            + 4 * (2 * H + tn) * 4)         # gain / shift / b_lin blocks (f32)


def _ddit_final_kernel(x_ref, gain_ref, shift_ref, w_lin_ref, b_lin_ref,
                       o_ref, y_ref):
    # Grid = (batch, seq-tile, out-channel-tile). The out-channel axis is the
    # innermost, "arbitrary" axis so the LN+modulate result can be computed once
    # per (batch, seq-tile) and reused across all out-channel tiles.
    @pl.when(pl.program_id(2) == 0)
    def _():
        x = x_ref[0].astype(jnp.float32)                      # (tS, H)
        mean = jnp.mean(x, axis=-1, keepdims=True)
        xc = x - mean
        var = jnp.mean(xc * xc, axis=-1, keepdims=True)
        xn = xc * jax.lax.rsqrt(var + 1e-5)
        # modulate_fused with the LayerNorm weight pre-folded into `gain`:
        #   layer_norm(x) * w_ln * (1 + scale) + shift == xn * gain + shift
        y = xn * gain_ref[0] + shift_ref[0]                   # (tS, H) f32
        y_ref[...] = y.astype(y_ref.dtype)

    # Final linear tile: (tS, H) @ (H, tN) in the compute dtype, f32 accumulation.
    out = jnp.dot(y_ref[...], w_lin_ref[...],
                  preferred_element_type=jnp.float32)         # (tS, tN) f32
    out = out + b_lin_ref[...]                                # (1, tN) f32 broadcast
    o_ref[0] = out.astype(o_ref.dtype)


def ddit_final_layer(x, c, w_ln, w_ada, b_ada, w_lin, b_lin,
                     *, block_s=None, block_n=None):
    """
    x:     (B, S, H)
    c:     (B, cond_dim)
    w_ln:  (H,)              LayerNorm weight
    w_ada: (cond_dim, 2H)    adaLN weight (transposed vs. torch nn.Linear)
    b_ada: (2H,)
    w_lin: (H, out)          final linear weight (transposed vs. torch nn.Linear)
    b_lin: (out,)
    """
    B, S, H = x.shape
    out_ch = w_lin.shape[-1]
    out_dtype = x.dtype
    compute_dtype = x.dtype          # bf16 in production -> full-rate MXU path

    # ---- adaLN modulation hoisted out of the kernel: one well-shaped GEMM for all B.
    mod = (c.astype(jnp.float32) @ w_ada.astype(jnp.float32)
           + b_ada.astype(jnp.float32))                            # (B, 2H)
    shift = mod[:, :H]                                             # (B, H)
    scale = mod[:, H:]                                             # (B, H)
    gain = w_ln.astype(jnp.float32)[None, :] * (1.0 + scale)       # (B, H)
    gain = gain[:, None, :]                                        # (B, 1, H)
    shift = shift[:, None, :]                                      # (B, 1, H)

    in_itemsize = jnp.dtype(compute_dtype).itemsize
    out_itemsize = jnp.dtype(out_dtype).itemsize

    # ---- Tile selection: lane-dense N tiles, S tiles sized against a VMEM budget
    #      conservative enough for v7x (64 MiB total, 32 MiB default scoped).
    tN = block_n if block_n is not None else min(512, _round_up(out_ch, 128))
    N_pad = _round_up(out_ch, tN)

    if block_s is not None:
        tS = block_s
    else:
        tS = min(1024, _round_up(S, 8))
        budget = 36 * 1024 * 1024
        while tS > 8 and _vmem_bytes(tS, tN, H, in_itemsize, out_itemsize) > budget:
            tS = max(8, _round_up(tS // 2, 8))
    S_pad = _round_up(S, tS)

    vmem_limit = int(min(max(_vmem_bytes(tS, tN, H, in_itemsize, out_itemsize)
                             + (16 << 20), 32 << 20), 56 << 20))

    # ---- Pad inputs so the block shapes tile exactly (padded rows/cols sliced off).
    x_p = x if S_pad == S else jnp.pad(x, ((0, 0), (0, S_pad - S), (0, 0)))
    w_lin_c = w_lin.astype(compute_dtype)
    b_lin_f = b_lin.astype(jnp.float32)
    if N_pad != out_ch:
        w_lin_c = jnp.pad(w_lin_c, ((0, 0), (0, N_pad - out_ch)))
        b_lin_f = jnp.pad(b_lin_f, (0, N_pad - out_ch))
    b_lin_2d = b_lin_f.reshape(1, N_pad)

    grid = (B, S_pad // tS, N_pad // tN)

    grid_spec = pltpu.PrefetchScalarGridSpec(
        num_scalar_prefetch=0,
        grid=grid,
        in_specs=[
            pl.BlockSpec((1, tS, H), lambda b, s, n: (b, s, 0)),   # x
            pl.BlockSpec((1, 1, H), lambda b, s, n: (b, 0, 0)),    # gain  (f32)
            pl.BlockSpec((1, 1, H), lambda b, s, n: (b, 0, 0)),    # shift (f32)
            pl.BlockSpec((H, tN), lambda b, s, n: (0, n)),         # w_lin
            pl.BlockSpec((1, tN), lambda b, s, n: (0, n)),         # b_lin (f32)
        ],
        out_specs=pl.BlockSpec((1, tS, tN), lambda b, s, n: (b, s, n)),
        scratch_shapes=[pltpu.VMEM((tS, H), compute_dtype)],       # cached LN+modulate
    )

    out_pad = pl.pallas_call(
        _ddit_final_kernel,
        out_shape=jax.ShapeDtypeStruct((B, S_pad, N_pad), out_dtype),
        grid_spec=grid_spec,
        compiler_params=pltpu.CompilerParams(
            dimension_semantics=("parallel", "parallel", "arbitrary"),
            vmem_limit_bytes=vmem_limit),
    )(x_p, gain, shift, w_lin_c, b_lin_2d)

    if S_pad != S or N_pad != out_ch:
        out_pad = out_pad[:, :S, :out_ch]
    return out_pad


def _reference(x, c, w_ln, w_ada, b_ada, w_lin, b_lin):
    """Pure-JAX reference matching the PyTorch forward."""
    mod = c.astype(jnp.float32) @ w_ada.astype(jnp.float32) + b_ada    # (B, 2H)
    H = x.shape[-1]
    shift = mod[:, None, :H]
    scale = mod[:, None, H:]
    xf = x.astype(jnp.float32)
    mean = jnp.mean(xf, axis=-1, keepdims=True)
    var = jnp.mean((xf - mean) ** 2, axis=-1, keepdims=True)
    xn = (xf - mean) * jax.lax.rsqrt(var + 1e-5) * w_ln
    y = xn * (1.0 + scale) + shift
    return (y @ w_lin.astype(jnp.float32) + b_lin).astype(x.dtype)


if __name__ == "__main__":
    key = jax.random.PRNGKey(0)

    # --- Test 1: small shapes, single tile in S and N (padded lane-dense output).
    B, S, H, cond_dim, out_ch = 2, 8, 32, 16, 4
    k = jax.random.split(key, 7)
    x = jax.random.normal(k[0], (B, S, H), dtype=jnp.float32)
    c = jax.random.normal(k[1], (B, cond_dim), dtype=jnp.float32)
    w_ln = jnp.ones((H,), dtype=jnp.float32)
    w_ada = 0.02 * jax.random.normal(k[2], (cond_dim, 2 * H), dtype=jnp.float32)
    b_ada = 0.01 * jax.random.normal(k[3], (2 * H,), dtype=jnp.float32)
    w_lin = 0.02 * jax.random.normal(k[4], (H, out_ch), dtype=jnp.float32)
    b_lin = 0.01 * jax.random.normal(k[5], (out_ch,), dtype=jnp.float32)

    out = jax.block_until_ready(
        ddit_final_layer(x, c, w_ln, w_ada, b_ada, w_lin, b_lin))
    ref = _reference(x, c, w_ln, w_ada, b_ada, w_lin, b_lin)
    assert out.shape == (B, S, out_ch), out.shape
    assert jnp.allclose(out, ref, atol=1e-5, rtol=1e-5), \
        float(jnp.max(jnp.abs(out - ref)))

    # --- Test 2: exercises multi-tile S and N (scratch reuse across N tiles + padding).
    B2, S2, H2, cond2, out2 = 2, 24, 32, 16, 300
    k2 = jax.random.split(jax.random.PRNGKey(1), 7)
    x2 = jax.random.normal(k2[0], (B2, S2, H2), dtype=jnp.float32)
    c2 = jax.random.normal(k2[1], (B2, cond2), dtype=jnp.float32)
    w_ln2 = 1.0 + 0.1 * jax.random.normal(k2[2], (H2,), dtype=jnp.float32)
    w_ada2 = 0.02 * jax.random.normal(k2[3], (cond2, 2 * H2), dtype=jnp.float32)
    b_ada2 = 0.01 * jax.random.normal(k2[4], (2 * H2,), dtype=jnp.float32)
    w_lin2 = 0.02 * jax.random.normal(k2[5], (H2, out2), dtype=jnp.float32)
    b_lin2 = 0.01 * jax.random.normal(k2[6], (out2,), dtype=jnp.float32)

    out2_v = jax.block_until_ready(
        ddit_final_layer(x2, c2, w_ln2, w_ada2, b_ada2, w_lin2, b_lin2,
                         block_s=8, block_n=128))
    ref2 = _reference(x2, c2, w_ln2, w_ada2, b_ada2, w_lin2, b_lin2)
    assert out2_v.shape == (B2, S2, out2), out2_v.shape
    assert jnp.allclose(out2_v, ref2, atol=1e-5, rtol=1e-5), \
        float(jnp.max(jnp.abs(out2_v - ref2)))

    print("KERNEL_OK")
</pallas_src>

<mosaic_0001>
module attributes {stable_mosaic.version = 11 : i64} {
  func.func @_ddit_final_kernel(%arg0: i32, %arg1: i32, %arg2: i32, %arg3: memref<1x8x32xf32, #tpu.memory_space<vmem>>, %arg4: memref<1x1x32xf32, #tpu.memory_space<vmem>>, %arg5: memref<1x1x32xf32, #tpu.memory_space<vmem>>, %arg6: memref<32x128xf32, #tpu.memory_space<vmem>>, %arg7: memref<1x128xf32, #tpu.memory_space<vmem>>, %arg8: memref<1x8x128xf32, #tpu.memory_space<vmem>>, %arg9: memref<8x32xf32, #tpu.memory_space<vmem>>) attributes {dimension_semantics = [#tpu.dimension_semantics<parallel>, #tpu.dimension_semantics<parallel>, #tpu.dimension_semantics<arbitrary>], iteration_bounds = array<i64: 2, 1, 1>, scalar_prefetch = 0 : i64, scratch_operands = 1 : i64, tpu.core_type = #tpu.core_type<tc>, window_params = [{transform_indices = @transform_0, window_bounds = array<i64: 1, 8, 32>}, {transform_indices = @transform_1, window_bounds = array<i64: 1, 1, 32>}, {transform_indices = @transform_2, window_bounds = array<i64: 1, 1, 32>}, {transform_indices = @transform_3, window_bounds = array<i64: 32, 128>}, {transform_indices = @transform_4, window_bounds = array<i64: 1, 128>}, {transform_indices = @transform_5, window_bounds = array<i64: 1, 8, 128>}]} {
    %c0_i32 = arith.constant 0 : i32
    %0 = arith.cmpi eq, %arg2, %c0_i32 : i32
    %1 = arith.extui %0 : i1 to i32
    %c0_i32_0 = arith.constant 0 : i32
    %2 = arith.cmpi ne, %1, %c0_i32_0 : i32
    scf.if %2 {
      %c0_9 = arith.constant 0 : index
      %c0_10 = arith.constant 0 : index
      %c0_11 = arith.constant 0 : index
      %12 = vector.load %arg3[%c0_9, %c0_10, %c0_11] : memref<1x8x32xf32, #tpu.memory_space<vmem>>, vector<1x8x32xf32>
      %13 = vector.shape_cast %12 : vector<1x8x32xf32> to vector<8x32xf32>
      %cst_12 = arith.constant dense<0.000000e+00> : vector<8xf32>
      %14 = vector.multi_reduction <add>, %13, %cst_12 [1] : vector<8x32xf32> to vector<8xf32>
      %15 = vector.shape_cast %14 : vector<8xf32> to vector<8x1xf32>
      %cst_13 = arith.constant 3.200000e+01 : f32
      %16 = vector.broadcast %cst_13 : f32 to vector<8x1xf32>
      %17 = arith.divf %15, %16 : vector<8x1xf32>
      %18 = vector.broadcast %17 : vector<8x1xf32> to vector<8x32xf32>
      %19 = arith.subf %13, %18 : vector<8x32xf32>
      %20 = arith.mulf %19, %19 : vector<8x32xf32>
      %cst_14 = arith.constant dense<0.000000e+00> : vector<8xf32>
      %21 = vector.multi_reduction <add>, %20, %cst_14 [1] : vector<8x32xf32> to vector<8xf32>
      %22 = vector.shape_cast %21 : vector<8xf32> to vector<8x1xf32>
      %cst_15 = arith.constant 3.200000e+01 : f32
      %23 = vector.broadcast %cst_15 : f32 to vector<8x1xf32>
      %24 = arith.divf %22, %23 : vector<8x1xf32>
      %cst_16 = arith.constant 9.99999974E-6 : f32
      %25 = vector.broadcast %cst_16 : f32 to vector<8x1xf32>
      %26 = arith.addf %24, %25 : vector<8x1xf32>
      %27 = math.rsqrt %26 : vector<8x1xf32>
      %28 = vector.broadcast %27 : vector<8x1xf32> to vector<8x32xf32>
      %29 = arith.mulf %19, %28 : vector<8x32xf32>
      %c0_17 = arith.constant 0 : index
      %c0_18 = arith.constant 0 : index
      %c0_19 = arith.constant 0 : index
      %30 = vector.load %arg4[%c0_17, %c0_18, %c0_19] : memref<1x1x32xf32, #tpu.memory_space<vmem>>, vector<1x1x32xf32>
      %31 = vector.shape_cast %30 : vector<1x1x32xf32> to vector<1x32xf32>
      %32 = vector.broadcast %31 : vector<1x32xf32> to vector<8x32xf32>
      %33 = arith.mulf %29, %32 : vector<8x32xf32>
      %c0_20 = arith.constant 0 : index
      %c0_21 = arith.constant 0 : index
      %c0_22 = arith.constant 0 : index
      %34 = vector.load %arg5[%c0_20, %c0_21, %c0_22] : memref<1x1x32xf32, #tpu.memory_space<vmem>>, vector<1x1x32xf32>
      %35 = vector.shape_cast %34 : vector<1x1x32xf32> to vector<1x32xf32>
      %36 = vector.broadcast %35 : vector<1x32xf32> to vector<8x32xf32>
      %37 = arith.addf %33, %36 : vector<8x32xf32>
      %c0_23 = arith.constant 0 : index
      %c0_24 = arith.constant 0 : index
      %38 = vector.load %arg9[%c0_23, %c0_24] : memref<8x32xf32, #tpu.memory_space<vmem>>, vector<8x32xf32>
      tpu.vector_store %arg9[%c0_23, %c0_24], %37 {strides = array<i32>} : memref<8x32xf32, #tpu.memory_space<vmem>>, vector<8x32xf32>,
    } else {
    }
    %c0 = arith.constant 0 : index
    %c0_1 = arith.constant 0 : index
    %3 = vector.load %arg9[%c0, %c0_1] : memref<8x32xf32, #tpu.memory_space<vmem>>, vector<8x32xf32>
    %c0_2 = arith.constant 0 : index
    %c0_3 = arith.constant 0 : index
    %4 = vector.load %arg6[%c0_2, %c0_3] : memref<32x128xf32, #tpu.memory_space<vmem>>, vector<32x128xf32>
    %cst = arith.constant dense<0.000000e+00> : vector<8x128xf32>
    %5 = tpu.matmul %3, %4, %cst {dimension_numbers = #tpu.dot_dimension_numbers<[1], [0], [0], [1], [0, 0, 1, 1], [], []>} : vector<8x32xf32>, vector<32x128xf32>, vector<8x128xf32> -> vector<8x128xf32>
    %c0_4 = arith.constant 0 : index
    %c0_5 = arith.constant 0 : index
    %6 = vector.load %arg7[%c0_4, %c0_5] : memref<1x128xf32, #tpu.memory_space<vmem>>, vector<1x128xf32>
    %7 = vector.broadcast %6 : vector<1x128xf32> to vector<8x128xf32>
    %8 = arith.addf %5, %7 : vector<8x128xf32>
    %c0_6 = arith.constant 0 : index
    %c0_7 = arith.constant 0 : index
    %c0_8 = arith.constant 0 : index
    %9 = vector.load %arg8[%c0_6, %c0_7, %c0_8] : memref<1x8x128xf32, #tpu.memory_space<vmem>>, vector<1x8x128xf32>
    %10 = vector.shape_cast %9 : vector<1x8x128xf32> to vector<8x128xf32>
    %11 = vector.shape_cast %8 : vector<8x128xf32> to vector<1x8x128xf32>
    tpu.vector_store %arg8[%c0_6, %c0_7, %c0_8], %11 {strides = array<i32>} : memref<1x8x128xf32, #tpu.memory_space<vmem>>, vector<1x8x128xf32>,
    return
  }
  func.func @transform_0(%arg0: i32, %arg1: i32, %arg2: i32) -> (i32, i32, i32) {
    %c0_i32 = arith.constant 0 : i32
    %c0_i32_0 = arith.constant 0 : i32
    return %arg0, %arg1, %c0_i32 : i32, i32, i32
  }
  func.func @transform_1(%arg0: i32, %arg1: i32, %arg2: i32) -> (i32, i32, i32) {
    %c0_i32 = arith.constant 0 : i32
    %c0_i32_0 = arith.constant 0 : i32
    %c0_i32_1 = arith.constant 0 : i32
    return %arg0, %c0_i32, %c0_i32_0 : i32, i32, i32
  }
  func.func @transform_2(%arg0: i32, %arg1: i32, %arg2: i32) -> (i32, i32, i32) {
    %c0_i32 = arith.constant 0 : i32
    %c0_i32_0 = arith.constant 0 : i32
    %c0_i32_1 = arith.constant 0 : i32
    return %arg0, %c0_i32, %c0_i32_0 : i32, i32, i32
  }
  func.func @transform_3(%arg0: i32, %arg1: i32, %arg2: i32) -> (i32, i32) {
    %c0_i32 = arith.constant 0 : i32
    %c0_i32_0 = arith.constant 0 : i32
    return %c0_i32, %arg2 : i32, i32
  }
  func.func @transform_4(%arg0: i32, %arg1: i32, %arg2: i32) -> (i32, i32) {
    %c0_i32 = arith.constant 0 : i32
    %c0_i32_0 = arith.constant 0 : i32
    return %c0_i32, %arg2 : i32, i32
  }
  func.func @transform_5(%arg0: i32, %arg1: i32, %arg2: i32) -> (i32, i32, i32) {
    %c0_i32 = arith.constant 0 : i32
    return %arg0, %arg1, %arg2 : i32, i32, i32
  }
}

</mosaic_0001>

<llo_original>
// kernel: tpu_custom_call.1
$region0: #{tpu_custom_call.1}
  #allocation0 [shape = 'u32[]', space=smem, size = 0x4, offset = 0x4, fixed_abs, tag = 'smem constant byte address 0x4 - core index']
  #allocation1 [shape = 'u32[72,128]{1,0:T(1,128)}', space=vmem, size = 0x9000, scoped, tag = 'internal scratch']
  #allocation2 [shape = 'f32[8,32]{1,0:T(8,128)}', space=vmem, size = 0x1000, scoped, tag = 'scratch operand']
  %s0 = inlined_call_operand.hbm [shape: f32[2,8,32], index: 0, kind: input, shape index: {}]
  %s1 = inlined_call_operand.hbm [shape: f32[2,1,32], index: 1, kind: input, shape index: {}]
  %s2 = inlined_call_operand.hbm [shape: f32[2,1,32], index: 2, kind: input, shape index: {}]
  %s3 = inlined_call_operand.hbm [shape: f32[32,128], index: 3, kind: input, shape index: {}]
  %s4 = inlined_call_operand.vmem [shape: f32[1,128], index: 4, kind: input, shape index: {}]
  %s5 = inlined_call_operand.hbm [shape: f32[2,8,128], index: 5, kind: output, shape index: {}]
  %s6 = sld [smem:[#allocation0]]
  $region73: #{tpu_custom_call.1} parent=0
    _
  %s8 = ssub.s32 1, %s6
  %s9 = scalar_select 0, %s8, %s6
  $region1: #{tpu_custom_call.1} parent=0
    #allocation3 [shape = 'u8[8192]{0}', space=vmem, size = 0x2000, scoped, tag = 'input window, operand 0']
    #allocation4 [shape = 's32[2]{0}', space=sflag, size = 0x8, scoped, tag = 'scoped memory for tpu_custom_call.1']
    #allocation5 [shape = 's32[2]{0}', space=sflag, size = 0x8, scoped, tag = 'scoped memory for tpu_custom_call.1']
    #allocation6 [shape = 'u8[1024]{0}', space=vmem, size = 0x400, scoped, tag = 'input window, operand 1']
    #allocation7 [shape = 's32[2]{0}', space=sflag, size = 0x8, scoped, tag = 'scoped memory for tpu_custom_call.1']
    #allocation8 [shape = 'u8[1024]{0}', space=vmem, size = 0x400, scoped, tag = 'input window, operand 2']
    #allocation9 [shape = 'u8[16384]{0}', space=vmem, size = 0x4000, scoped, tag = 'input window, operand 3, single buffered']
    #allocation10 [shape = 's32[1]{0}', space=sflag, size = 0x4, scoped, tag = 'scoped memory for tpu_custom_call.1']
    #allocation11 [shape = 'u8[8192]{0}', space=vmem, size = 0x2000, scoped, tag = 'output window, operand 0']
    %10 = vsyncpa [#allocation4], 0
    %s11 = scalar_lea.sflag [#allocation4], 1
    %12 = vsyncpa %s11, 0
    %13 = vsyncpa [#allocation7], 0
    %s14 = scalar_lea.sflag [#allocation7], 1
    %15 = vsyncpa %s14, 0
    %16 = vsyncpa [#allocation10], 0
    %17 = vsyncpa [#allocation5], 0
    %s18 = scalar_lea.sflag [#allocation5], 1
    %19 = vsyncpa %s18, 0
    loop: start=0, step=1, limit=4
    $region2: #{tpu_custom_call.1} parent=1 // loop_pre_header
      _
    $region3: #{tpu_custom_call.1} parent=1 // loop_header
      %s21 = sphi 0, %s25
      %p22 = scmp.ge.s32.totalorder %s21, 4
      %s28 = sphi 0, %s47
      %s29 = sphi 0, %s43
      %s30 = sphi 0, %s39
      %s31 = sphi 0, %s28
      %s32 = sphi 0, %s29
      %s33 = sphi 0, %s30
      %s34 = sphi 0, %s31
      %s35 = sphi 0, %s32
      %s36 = sphi 0, %s33
      %s52 = sphi 0, %s54
      %s55 = sphi 0, %s52
      %s56 = sphi 0, %s55
      %s72 = sphi 0, %s56
      %s78 = sphi 0, %s80
      %s81 = sphi 0, %s78
      %s82 = sphi 0, %s81
      %s98 = sphi 0, %s82
      %s104 = sphi 0, %s106
      %s107 = sphi 0, %s104
      %s108 = sphi 0, %s107
      %s124 = sphi 0, %s108
      %s130 = sphi 0, %s132
      %s133 = sphi 0, %s130
      %s134 = sphi 0, %s133
      %s150 = sphi 0, %s134
      %s156 = sphi 0, %s158
      %s159 = sphi 0, %s156
      %s160 = sphi 0, %s159
      %s176 = sphi 0, %s160
      %s186 = sphi 0, %s188
      %s189 = sphi 0, %s186
      %s190 = sphi 0, %s189
      %s206 = sphi 0, %s190
    $region4: #{tpu_custom_call.1} parent=1 // loop_header_branch
      %24 = sbr.rel (%p22) target = $region8
    $region5: #{tpu_custom_call.1} parent=1 // loop_body
      %s26 = ssub.s32 %s21, 1
      %s27 = ssub.s32 %s21, 2
      %s37 = sadd.s32 1, %s30
      %p38 = scmp.ge.s32.totalorder %s37, 1
      %s39 = scalar_select %p38, 0, %s37
      %s40 = sadd.s32 1, %s29
      %s41 = scalar_select %p38, %s40, %s29
      %p42 = scmp.ge.s32.totalorder %s41, 1
      %s43 = scalar_select %p42, 0, %s41
      %s44 = sadd.s32 1, %s28
      %s45 = scalar_select %p42, %s44, %s28
      %p46 = scmp.ge.s32.totalorder %s45, 2
      %s47 = scalar_select %p46, 0, %s45
      %s48 = ssub.s32 %s28, %s47
      %s49 = ssub.s32 %s29, %s43
      %s50 = sor.u32 %s48, %s49
      %p51 = scmp.eq.s32.totalorder %s50, 0
      %s53 = sadd.s32 %s52, 1
      %s54 = scalar_select %p51, %s52, %s53
      %p57 = pneg %p51
      %p58 = scmp.eq.s32.totalorder %s21, 1
      %p59 = por %p57, %p58
      %p60 = scmp.ne.s32.totalorder %s52, %s55
      %p61 = scmp.eq.s32.totalorder %s21, 0
      %p62 = por %p60, %p61
      %p63 = scmp.ne.s32.totalorder %s52, %s55
      %p64 = scmp.eq.s32.totalorder %s26, 1
      %p65 = por %p63, %p64
      %p66 = scmp.ne.s32.totalorder %s55, %s56
      %p67 = scmp.eq.s32.totalorder %s26, 0
      %p68 = por %p66, %p67
      %p69 = scmp.ne.s32.totalorder %s55, %s56
      %p70 = scmp.eq.s32.totalorder %s27, 1
      %p71 = por %p69, %p70
      %p73 = scmp.ne.s32.totalorder %s56, %s72
      %p74 = scmp.eq.s32.totalorder %s27, 0
      %p75 = por %p73, %p74
      %s76 = ssub.s32 %s28, %s47
      %p77 = scmp.eq.s32.totalorder %s76, 0
      %s79 = sadd.s32 %s78, 1
      %s80 = scalar_select %p77, %s78, %s79
      %p83 = pneg %p77
      %p84 = scmp.eq.s32.totalorder %s21, 1
      %p85 = por %p83, %p84
      %p86 = scmp.ne.s32.totalorder %s78, %s81
      %p87 = scmp.eq.s32.totalorder %s21, 0
      %p88 = por %p86, %p87
      %p89 = scmp.ne.s32.totalorder %s78, %s81
      %p90 = scmp.eq.s32.totalorder %s26, 1
      %p91 = por %p89, %p90
      %p92 = scmp.ne.s32.totalorder %s81, %s82
      %p93 = scmp.eq.s32.totalorder %s26, 0
      %p94 = por %p92, %p93
      %p95 = scmp.ne.s32.totalorder %s81, %s82
      %p96 = scmp.eq.s32.totalorder %s27, 1
      %p97 = por %p95, %p96
      %p99 = scmp.ne.s32.totalorder %s82, %s98
      %p100 = scmp.eq.s32.totalorder %s27, 0
      %p101 = por %p99, %p100
      %s102 = ssub.s32 %s28, %s47
      %p103 = scmp.eq.s32.totalorder %s102, 0
      %s105 = sadd.s32 %s104, 1
      %s106 = scalar_select %p103, %s104, %s105
      %p109 = pneg %p103
      %p110 = scmp.eq.s32.totalorder %s21, 1
      %p111 = por %p109, %p110
      %p112 = scmp.ne.s32.totalorder %s104, %s107
      %p113 = scmp.eq.s32.totalorder %s21, 0
      %p114 = por %p112, %p113
      %p115 = scmp.ne.s32.totalorder %s104, %s107
      %p116 = scmp.eq.s32.totalorder %s26, 1
      %p117 = por %p115, %p116
      %p118 = scmp.ne.s32.totalorder %s107, %s108
      %p119 = scmp.eq.s32.totalorder %s26, 0
      %p120 = por %p118, %p119
      %p121 = scmp.ne.s32.totalorder %s107, %s108
      %p122 = scmp.eq.s32.totalorder %s27, 1
      %p123 = por %p121, %p122
      %p125 = scmp.ne.s32.totalorder %s108, %s124
      %p126 = scmp.eq.s32.totalorder %s27, 0
      %p127 = por %p125, %p126
      %s128 = ssub.s32 %s30, %s39
      %p129 = scmp.eq.s32.totalorder %s128, 0
      %s131 = sadd.s32 %s130, 1
      %s132 = scalar_select %p129, %s130, %s131
      %p135 = pneg %p129
      %p136 = scmp.eq.s32.totalorder %s21, 1
      %p137 = por %p135, %p136
      %p138 = scmp.ne.s32.totalorder %s130, %s133
      %p139 = scmp.eq.s32.totalorder %s21, 0
      %p140 = por %p138, %p139
      %p141 = scmp.ne.s32.totalorder %s130, %s133
      %p142 = scmp.eq.s32.totalorder %s26, 1
      %p143 = por %p141, %p142
      %p144 = scmp.ne.s32.totalorder %s133, %s134
      %p145 = scmp.eq.s32.totalorder %s26, 0
      %p146 = por %p144, %p145
      %p147 = scmp.ne.s32.totalorder %s133, %s134
      %p148 = scmp.eq.s32.totalorder %s27, 1
      %p149 = por %p147, %p148
      %p151 = scmp.ne.s32.totalorder %s134, %s150
      %p152 = scmp.eq.s32.totalorder %s27, 0
      %p153 = por %p151, %p152
      %s154 = ssub.s32 %s30, %s39
      %p155 = scmp.eq.s32.totalorder %s154, 0
      %s157 = sadd.s32 %s156, 1
      %s158 = scalar_select %p155, %s156, %s157
      %p161 = pneg %p155
      %p162 = scmp.eq.s32.totalorder %s21, 1
      %p163 = por %p161, %p162
      %p164 = scmp.ne.s32.totalorder %s156, %s159
      %p165 = scmp.eq.s32.totalorder %s21, 0
      %p166 = por %p164, %p165
      %p167 = scmp.ne.s32.totalorder %s156, %s159
      %p168 = scmp.eq.s32.totalorder %s26, 1
      %p169 = por %p167, %p168
      %p170 = scmp.ne.s32.totalorder %s159, %s160
      %p171 = scmp.eq.s32.totalorder %s26, 0
      %p172 = por %p170, %p171
      %p173 = scmp.ne.s32.totalorder %s159, %s160
      %p174 = scmp.eq.s32.totalorder %s27, 1
      %p175 = por %p173, %p174
      %p177 = scmp.ne.s32.totalorder %s160, %s176
      %p178 = scmp.eq.s32.totalorder %s27, 0
      %p179 = por %p177, %p178
      %s180 = ssub.s32 %s28, %s47
      %s181 = ssub.s32 %s29, %s43
      %s182 = sor.u32 %s180, %s181
      %s183 = ssub.s32 %s30, %s39
      %s184 = sor.u32 %s182, %s183
      %p185 = scmp.eq.s32.totalorder %s184, 0
      %s187 = sadd.s32 %s186, 1
      %s188 = scalar_select %p185, %s186, %s187
      %p191 = pneg %p185
      %p192 = scmp.eq.s32.totalorder %s21, 1
      %p193 = por %p191, %p192
      %p194 = scmp.ne.s32.totalorder %s186, %s189
      %p195 = scmp.eq.s32.totalorder %s21, 0
      %p196 = por %p194, %p195
      %p197 = scmp.ne.s32.totalorder %s186, %s189
      %p198 = scmp.eq.s32.totalorder %s26, 1
      %p199 = por %p197, %p198
      %p200 = scmp.ne.s32.totalorder %s189, %s190
      %p201 = scmp.eq.s32.totalorder %s26, 0
      %p202 = por %p200, %p201
      %p203 = scmp.ne.s32.totalorder %s189, %s190
      %p204 = scmp.eq.s32.totalorder %s27, 1
      %p205 = por %p203, %p204
      %p207 = scmp.ne.s32.totalorder %s190, %s206
      %p208 = scmp.eq.s32.totalorder %s27, 0
      %p209 = por %p207, %p208
      %p210 = scmp.le.s32.totalorder 1, %s21
      %p211 = scmp.lt.s32.totalorder %s21, 3
      %p212 = pnand %p210, %p211
      %p213 = pneg %p212
      // Predicated region
      $region9: #{tpu_custom_call.1} parent=5 // pred_check
        _
      $region10: #{tpu_custom_call.1} parent=5 // pred_check_branch
        %215 = sbr.rel (%p212) target = $region12
      $region11: #{tpu_custom_call.1} parent=5 // pred_region
        %s216 = ssub.s32 %s21, 1
        // Predicated region
        $region13: #{tpu_custom_call.1} parent=11 // pred_check
          %p217 = pneg %p146
        $region14: #{tpu_custom_call.1} parent=11 // pred_check_branch
          %219 = sbr.rel (%p217) target = $region16
        $region15: #{tpu_custom_call.1} parent=11 // pred_region
          %221 = vsyncadd [#allocation10], 0
          %s222 = smul.addr %s33, 8
          %s223 = scalar_lea.hbm %s3, %s222
          %s224 = sshll.u32 %s223, 4
          %s225 = int_to_ptr.hbm [resolvable:$true] %s224
          %s226 = sshll.u32 [#allocation9], 4
          %s227 = int_to_ptr.vmem [resolvable:$true] %s226
          %232 = dma.hbm_to_vmem [thread:$0]  %s225, 512, %s227, [#allocation10], 128, 128, 8
        $region16: #{tpu_custom_call.1} parent=11 // pred_fallthru
          _
        // Predicated region
        $region17: #{tpu_custom_call.1} parent=11 // pred_check
          %p233 = pneg %p172
        $region18: #{tpu_custom_call.1} parent=11 // pred_check_branch
          %235 = sbr.rel (%p233) target = $region20
        $region19: #{tpu_custom_call.1} parent=11 // pred_region
          %p236 = scmp.lt.s32.totalorder %s33, 0
          %s237 = scalar_select %p236, %s33, 0
          %s238 = scalar_lea.vmem %s4, %s237
        $region20: #{tpu_custom_call.1} parent=11 // pred_fallthru
          _
      $region12: #{tpu_custom_call.1} parent=5 // pred_fallthru
        _
      %p239 = scmp.lt.s32.totalorder %s21, 2
      // Predicated region
      $region21: #{tpu_custom_call.1} parent=5 // pred_check
        %p240 = pneg %p239
      $region22: #{tpu_custom_call.1} parent=5 // pred_check_branch
        %242 = sbr.rel (%p240) target = $region24
      $region23: #{tpu_custom_call.1} parent=5 // pred_region
        // Predicated region
        $region25: #{tpu_custom_call.1} parent=23 // pred_check
          %p243 = pneg %p62
        $region26: #{tpu_custom_call.1} parent=23 // pred_check_branch
          %245 = sbr.rel (%p243) target = $region28
        $region27: #{tpu_custom_call.1} parent=23 // pred_region
          %s246 = sand.u32 %s52, 1
          %s247 = scalar_lea.sflag [#allocation4], %s246
          %s248 = sand.u32 %s52, 1
          %s249 = smul.addr %s248, 8
          %s250 = scalar_lea.vmem [#allocation3], %s249
          %252 = vsyncadd %s247, 0
          %s253 = sadd.s32 %s29, %s28
          %s254 = smul.addr %s253, 8
          %s255 = scalar_lea.hbm %s0, %s254
          %s257 = sshll.u32 %s255, 4
          %s258 = int_to_ptr.hbm [resolvable:$true] %s257
          %s259 = sshll.u32 %s250, 4
          %s260 = int_to_ptr.vmem [resolvable:$true] %s259
          %262 = dma.hbm_to_vmem [thread:$0]  %s258, 128, %s260, %s247
        $region28: #{tpu_custom_call.1} parent=23 // pred_fallthru
          _
        // Predicated region
        $region29: #{tpu_custom_call.1} parent=23 // pred_check
          %p263 = pneg %p88
        $region30: #{tpu_custom_call.1} parent=23 // pred_check_branch
          %265 = sbr.rel (%p263) target = $region32
        $region31: #{tpu_custom_call.1} parent=23 // pred_region
          %s266 = sand.u32 %s21, 1
          %s267 = scalar_lea.sflag [#allocation7], %s266
          %s268 = sand.u32 %s78, 1
          %s269 = scalar_lea.vmem [#allocation6], %s268
          %271 = vsyncadd %s267, 0
          %s272 = scalar_lea.hbm %s1, %s28
          %s274 = sshll.u32 %s272, 4
          %s275 = int_to_ptr.hbm [resolvable:$true] %s274
          %s276 = sshll.u32 %s269, 4
          %s277 = int_to_ptr.vmem [resolvable:$true] %s276
          %279 = dma.hbm_to_vmem [thread:$0]  %s275, 16, %s277, %s267
        $region32: #{tpu_custom_call.1} parent=23 // pred_fallthru
          _
        // Predicated region
        $region33: #{tpu_custom_call.1} parent=23 // pred_check
          %p280 = pneg %p114
        $region34: #{tpu_custom_call.1} parent=23 // pred_check_branch
          %282 = sbr.rel (%p280) target = $region36
        $region35: #{tpu_custom_call.1} parent=23 // pred_region
          %s283 = sand.u32 %s21, 1
          %s284 = scalar_lea.sflag [#allocation7], %s283
          %s285 = sand.u32 %s104, 1
          %s286 = scalar_lea.vmem [#allocation8], %s285
          %288 = vsyncadd %s284, 0
          %s289 = scalar_lea.hbm %s2, %s28
          %s291 = sshll.u32 %s289, 4
          %s292 = int_to_ptr.hbm [resolvable:$true] %s291
          %s293 = sshll.u32 %s286, 4
          %s294 = int_to_ptr.vmem [resolvable:$true] %s293
          %296 = dma.hbm_to_vmem [thread:$0]  %s292, 16, %s294, %s284
        $region36: #{tpu_custom_call.1} parent=23 // pred_fallthru
          _
      $region24: #{tpu_custom_call.1} parent=5 // pred_fallthru
        _
      %p297 = scmp.le.s32.totalorder 1, %s21
      %p298 = scmp.lt.s32.totalorder %s21, 3
      %p299 = pnand %p297, %p298
      %p300 = pneg %p299
      // Predicated region
      $region37: #{tpu_custom_call.1} parent=5 // pred_check
        _
      $region38: #{tpu_custom_call.1} parent=5 // pred_check_branch
        %302 = sbr.rel (%p299) target = $region40
      $region39: #{tpu_custom_call.1} parent=5 // pred_region
        %s303 = ssub.s32 %s21, 1
        %s304 = sand.u32 %s55, 1
        %s305 = scalar_lea.sflag [#allocation4], %s304
        %s306 = sand.u32 %s55, 1
        %s307 = smul.addr %s306, 8
        %s308 = scalar_lea.vmem [#allocation3], %s307
        // Predicated region
        $region41: #{tpu_custom_call.1} parent=39 // pred_check
          %p309 = pneg %p68
        $region42: #{tpu_custom_call.1} parent=39 // pred_check_branch
          %311 = sbr.rel (%p309) target = $region44
        $region43: #{tpu_custom_call.1} parent=39 // pred_region
          %313 = dma.done %s305, 128
        $region44: #{tpu_custom_call.1} parent=39 // pred_fallthru
          _
        %s314 = sand.u32 %s26, 1
        %s315 = scalar_lea.sflag [#allocation7], %s314
        %s316 = sand.u32 %s81, 1
        %s317 = scalar_lea.vmem [#allocation6], %s316
        // Predicated region
        $region45: #{tpu_custom_call.1} parent=39 // pred_check
          %p318 = pneg %p94
        $region46: #{tpu_custom_call.1} parent=39 // pred_check_branch
          %320 = sbr.rel (%p318) target = $region48
        $region47: #{tpu_custom_call.1} parent=39 // pred_region
          %322 = dma.done %s315, 16
        $region48: #{tpu_custom_call.1} parent=39 // pred_fallthru
          _
        %s323 = sand.u32 %s26, 1
        %s324 = scalar_lea.sflag [#allocation7], %s323
        %s325 = sand.u32 %s107, 1
        %s326 = scalar_lea.vmem [#allocation8], %s325
        // Predicated region
        $region49: #{tpu_custom_call.1} parent=39 // pred_check
          %p327 = pneg %p120
        $region50: #{tpu_custom_call.1} parent=39 // pred_check_branch
          %329 = sbr.rel (%p327) target = $region52
        $region51: #{tpu_custom_call.1} parent=39 // pred_region
          %331 = dma.done %s324, 16
        $region52: #{tpu_custom_call.1} parent=39 // pred_fallthru
          _
        // Predicated region
        $region53: #{tpu_custom_call.1} parent=39 // pred_check
          %p332 = pneg %p146
        $region54: #{tpu_custom_call.1} parent=39 // pred_check_branch
          %334 = sbr.rel (%p332) target = $region56
        $region55: #{tpu_custom_call.1} parent=39 // pred_region
          %336 = dma.done [#allocation10], 512
        $region56: #{tpu_custom_call.1} parent=39 // pred_fallthru
          _
        %s337 = sand.u32 %s55, 1
        %s338 = scalar_lea.sflag [#allocation4], %s337
        %s339 = sand.u32 %s55, 1
        %s340 = smul.addr %s339, 8
        %s341 = scalar_lea.vmem [#allocation3], %s340
        %p342 = pneg %p68
        %p343 = pneg %p65
        %s344 = sand.u32 %s26, 1
        %s345 = scalar_lea.sflag [#allocation7], %s344
        %s346 = sand.u32 %s81, 1
        %s347 = scalar_lea.vmem [#allocation6], %s346
        %p348 = pneg %p94
        %p349 = pneg %p91
        %s350 = sand.u32 %s26, 1
        %s351 = scalar_lea.sflag [#allocation7], %s350
        %s352 = sand.u32 %s107, 1
        %s353 = scalar_lea.vmem [#allocation8], %s352
        %p354 = pneg %p120
        %p355 = pneg %p117
        %p356 = pneg %p146
        %p357 = pneg %p143
        %p358 = scmp.lt.s32.totalorder %s33, 0
        %s359 = scalar_select %p358, %s33, 0
        %s360 = scalar_lea.vmem %s4, %s359
        %p361 = pneg %p172
        %p362 = pneg %p169
        %p363 = pneg %p202
        %p364 = pneg %p199
        %s365 = sand.u32 %s189, 1
        %s366 = scalar_lea.sflag [#allocation5], %s365
        %s367 = sand.u32 %s189, 1
        %s368 = smul.addr %s367, 8
        %s369 = scalar_lea.vmem [#allocation11], %s368
        %p370 = scmp.lt.s32.totalorder %s33, 0
        %s371 = scalar_select %p370, %s33, 0
        %s372 = scalar_lea.vmem %s4, %s371
        %p373 = scmp.eq.s32.totalorder %s33, 0
        // Predicated region
        $region57: #{tpu_custom_call.1} parent=39 // pred_check
          %p374 = pneg %p373
        $region58: #{tpu_custom_call.1} parent=39 // pred_check_branch
          %376 = sbr.rel (%p374) target = $region60
        $region59: #{tpu_custom_call.1} parent=39 // pred_region
          %v377 = vld [vmem:[%s308] sm:$0xff]
          %vm378 = vcmask 261120
          %v379 = vsel %vm378, %v377, 0.0
          %380 = vadd.xlane.f32.xlu0 %v379
          %v381 = vpop.xlane.xlu0 %380
          %v382 = vrcp.pop 32.0
          %v383 = vmul.f32 32.0, %v382
          %v384 = vsub.f32 1.0, %v383
          %v385 = vmul.f32 %v382, %v384
          %v386 = vadd.f32 %v382, %v385
          %vm387 = vweird.f32 %v382
          %v388 = vsel %vm387, %v382, %v386
          %v389 = vmul.f32 %v381, %v388
          %v390 = vsub.f32 %v377, %v389
          %v391 = vmul.f32 %v390, %v390
          %v392 = vsel %vm378, %v391, 0.0
          %393 = vadd.xlane.f32.xlu0 %v392
          %v394 = vpop.xlane.xlu0 %393
          %v395 = vmul.f32 %v394, %v388
          %v396 = vadd.f32 %v395, 1e-05
          %v397 = vrsqrt.pop %v396
          %v398 = vmul.f32 %v397, %v396
          %v399 = vmul.f32 %v398, %v397
          %v400 = vmul.f32 0.5, %v399
          %v401 = vsub.f32 1.5, %v400
          %v402 = vmul.f32 %v397, %v401
          %vm403 = vweird.f32 %v396
          %vm404 = vweird.f32 %v397
          %vm405 = vmor %vm403, %vm404
          %v406 = vsel %vm405, %v397, %v402
          %v407 = vmul.f32 %v390, %v406
          %v408 = vld [vmem:[%s317] sm:$0x1]
          %v410 = vperm.slane %v408, 0
          %v412 = vmul.f32 %v407, %v410
          %v413 = vld [vmem:[%s326] sm:$0x1]
          %v415 = vperm.slane %v413, 0
          %v417 = vadd.f32 %v412, %v415
          %418 = vst.msk [vmem:[#allocation2] sm:$0xff] %vm378, %v417
        $region60: #{tpu_custom_call.1} parent=39 // pred_fallthru
          _
        %v419 = vld [vmem:[#allocation2] sm:$0xff]
        %v420 = vld [vmem:[#allocation9] sm:$0xff]
        %v421 = vld [vmem:[#allocation9 + $0x8] sm:$0xff]
        %v422 = vld [vmem:[#allocation9 + $0x10] sm:$0xff]
        %v423 = vld [vmem:[#allocation9 + $0x18] sm:$0xff]
        %v424 = vld [vmem:[%s372] sm:$0x1]
        %v426 = vperm.slane %v424, 0
        %vm428 = vcmask 261120
        %v430 = vsel %vm428, %v419, 0
        %432 = vmatpush.msra.mxu0 0.0
        %433 = vmatpush.msra.mxu0 0.0
        %434 = vmatpush.msra.mxu0 0.0
        %435 = vmatpush.msra.mxu0 0.0
        %436 = vmatpush.msra.mxu0 0.0
        %437 = vmatpush.msra.mxu0 0.0
        %438 = vmatpush.msra.mxu0 0.0
        %439 = vmatpush.msra.mxu0 0.0
        %440 = vmatpush.msra.mxu0 0.0
        %441 = vmatpush.msra.mxu0 0.0
        %442 = vmatpush.msra.mxu0 0.0
        %443 = vmatpush.msra.mxu0 0.0
        %444 = vmatpush.msra.mxu0 %v423
        %445 = vmatpush.msra.mxu0 %v422
        %446 = vmatpush.msra.mxu0 %v421
        %447 = vmatpush.msra.mxu0 %v420
        %448 = vmatmul.f32.gmra.mxu0 %v430
        %v449 = vpop.f32.mrf.mxu0
        %v450 = vadd.f32 %v426, %v449
        %451 = vdwg.mxu0
        %452 = vst [vmem:[%s369] sm:$0xff] %v450
        %s453 = sand.u32 %s189, 1
        %s454 = scalar_lea.sflag [#allocation5], %s453
        %s455 = sand.u32 %s189, 1
        %s456 = smul.addr %s455, 8
        %s457 = scalar_lea.vmem [#allocation11], %s456
        // Predicated region
        $region61: #{tpu_custom_call.1} parent=39 // pred_check
          %p458 = pneg %p199
        $region62: #{tpu_custom_call.1} parent=39 // pred_check_branch
          %460 = sbr.rel (%p458) target = $region64
        $region63: #{tpu_custom_call.1} parent=39 // pred_region
          %462 = vsyncadd %s454, 0
          %s463 = sadd.s32 %s33, %s32
          %s464 = sadd.s32 %s463, %s31
          %s465 = smul.addr %s464, 8
          %s466 = scalar_lea.hbm %s5, %s465
          %s468 = sshll.u32 %s457, 4
          %s469 = int_to_ptr.vmem [resolvable:$true] %s468
          %s470 = sshll.u32 %s466, 4
          %s471 = int_to_ptr.hbm [resolvable:$true] %s470
          %473 = dma.vmem_to_hbm [thread:$0]  %s469, 128, %s471, %s454
        $region64: #{tpu_custom_call.1} parent=39 // pred_fallthru
          _
      $region40: #{tpu_custom_call.1} parent=5 // pred_fallthru
        _
      %p474 = scmp.le.s32.totalorder 2, %s21
      // Predicated region
      $region65: #{tpu_custom_call.1} parent=5 // pred_check
        %p475 = pneg %p474
      $region66: #{tpu_custom_call.1} parent=5 // pred_check_branch
        %477 = sbr.rel (%p475) target = $region68
      $region67: #{tpu_custom_call.1} parent=5 // pred_region
        %s478 = ssub.s32 %s21, 2
        // Predicated region
        $region69: #{tpu_custom_call.1} parent=67 // pred_check
          %p479 = pneg %p205
        $region70: #{tpu_custom_call.1} parent=67 // pred_check_branch
          %481 = sbr.rel (%p479) target = $region72
        $region71: #{tpu_custom_call.1} parent=67 // pred_region
          %s482 = sand.u32 %s190, 1
          %s483 = scalar_lea.sflag [#allocation5], %s482
          %s484 = sand.u32 %s190, 1
          %s485 = smul.addr %s484, 8
          %s486 = scalar_lea.vmem [#allocation11], %s485
          %488 = dma.done %s483, 128
        $region72: #{tpu_custom_call.1} parent=67 // pred_fallthru
          _
      $region68: #{tpu_custom_call.1} parent=5 // pred_fallthru
        _
    $region6: #{tpu_custom_call.1} parent=1 // loop_footer
      %s25 = sadd.s32 1, %s21
    $region7: #{tpu_custom_call.1} parent=1 // loop_footer_branch
      %20 = sbr.rel target = $region3
    $region8: #{tpu_custom_call.1} parent=1 // loop_exit
      _
    %489 = vsyncpa [#allocation4], 1
    %s490 = scalar_lea.sflag [#allocation4], 1
    %491 = vsyncpa %s490, 1
    %492 = vsyncpa [#allocation7], 1
    %s493 = scalar_lea.sflag [#allocation7], 1
    %494 = vsyncpa %s493, 1
    %495 = vsyncpa [#allocation10], 1
    %496 = vsyncpa [#allocation5], 1
    %s497 = scalar_lea.sflag [#allocation5], 1
    %498 = vsyncpa %s497, 1

</llo_original>
